<compile_context>
chip_gen: v6e
topology: v6e:2x2x1
jax: 0.10.0
libtpu: 0.0.40
codegen_flags: <defaults>
</compile_context>

<pallas_src>
import functools
import math

import jax
import jax.numpy as jnp
from jax.experimental import pallas as pl
from jax.experimental.pallas import tpu as pltpu


def _round_up(x, m):
    return (x + m - 1) // m * m


def _dice_bce_kernel(x_ref, lab_ref, inter_ref, psum_ref, tsum_ref, bce_ref, *,
                     num_classes, tile_s):
    t_idx = pl.program_id(2)

    @pl.when(t_idx == 0)
    def _init():
        inter_ref[...] = jnp.zeros_like(inter_ref)
        psum_ref[...] = jnp.zeros_like(psum_ref)
        tsum_ref[...] = jnp.zeros_like(tsum_ref)
        bce_ref[...] = jnp.zeros_like(bce_ref)

    x = x_ref[0].astype(jnp.float32)      # (C, tile_s, 128) logits (f32 compute)
    lab = lab_ref[0].astype(jnp.int32)    # (tile_s, 128) labels (sentinel==C on pad)

    # One-hot target planes via scalar-constant compares (no iota temporary).
    # Padded pixels hold the sentinel label == C, so every plane is 0 there
    # and no spatial mask is needed.
    t = jnp.stack(
        [(lab == c).astype(jnp.float32) for c in range(num_classes)], axis=0)

    # --- channel softmax (torch: F.softmax(inputs, dim=1)) ---
    # C is the plane axis: max/sum over axis 0 are plane-wise VPU ops.
    m = jnp.max(x, axis=0, keepdims=True)          # (1, tile_s, 128)
    e = jnp.exp(x - m)                             # (C, tile_s, 128)
    denom = jnp.sum(e, axis=0, keepdims=True)
    p = e * pl.reciprocal(denom, approx=False)

    # --- BCE(sigmoid(x), t) = softplus(x) - t*x, reusing the softmax exp ---
    #   softplus(x_c) = m + log(e_c + exp(-m))
    # exp arg clamped at 60 so exp(-m) never overflows f32; softplus >= 0
    # clamp restores the (negligible) m < -60 tail.  Padded pixels (x = -1e4,
    # t = 0) come out exactly 0 here.
    exp_neg_m = jnp.exp(-jnp.maximum(m, -60.0))
    sp = jnp.maximum(m + jnp.log(e + exp_neg_m), 0.0)
    bce_elem = sp - t * x

    # --- lane+sublane-structured partial sums ---
    # Only collapse whole-vreg groups here (pure vadds); the 8-sublane/lane
    # collapse happens once in the wrapper.
    g = tile_s // 8
    inter_ref[0, 0] = inter_ref[0, 0] + jnp.sum(
        (p * t).reshape(num_classes, g, 8, 128), axis=1)        # (C, 8, 128)
    psum_ref[0, 0] = psum_ref[0, 0] + jnp.sum(
        p.reshape(num_classes, g, 8, 128), axis=1)              # (C, 8, 128)
    tsum_ref[0, 0] = tsum_ref[0, 0] + jnp.sum(
        t.reshape(num_classes, g, 8, 128), axis=1)              # (C, 8, 128)
    bce_ref[0, 0] = bce_ref[0, 0] + jnp.sum(
        jnp.sum(bce_elem, axis=0).reshape(g, 8, 128), axis=0)   # (8, 128)


def _vmem_capacity_bytes():
    try:
        info = pltpu.get_tpu_info()
        for name in ("vmem_capacity_bytes", "vmem_size_bytes", "vmem_bytes"):
            cap = getattr(info, name, None)
            if cap:
                return int(cap)
    except Exception:
        pass
    return 64 * 1024 * 1024   # conservative (v7x-sized) default


def dice_loss_with_bce(inputs_nchw, labels_nhw, *, smooth=1.0, bce_weight=0.5):
    """Pallas implementation of DiceLossWithBCE.forward.

    inputs_nchw: (N, C, H, W) logits (any float dtype; computed in f32)
    labels_nhw:  (N, H, W) integer class labels; targets == one_hot(labels)
    """
    N, C, H, W = inputs_nchw.shape
    assert C > 1, "kernel implements the C>1 (softmax) branch"
    # TODO(synk): the C==1 sigmoid branch and arbitrary (non-one-hot) float
    # BCE targets are not covered by this label-based fast path.
    HW = H * W
    S = pl.cdiv(HW, 128)

    # Generation-aware tiling.
    vmem_cap = _vmem_capacity_bytes()
    if vmem_cap >= 128 * 1024 * 1024:         # v5e / v6e
        target_bytes, vmem_limit = 4 << 20, 64 << 20
    else:                                     # v7x (or unknown)
        target_bytes, vmem_limit = 2 << 20, 48 << 20

    itemsize = jnp.dtype(inputs_nchw.dtype).itemsize
    tile_cap = max(32, (target_bytes // (C * 128 * itemsize)) // 32 * 32)
    T = pl.cdiv(S, tile_cap)
    tile_s = _round_up(pl.cdiv(S, T), 32)     # multiple of 32: int8 label tiling
    S_pad = T * tile_s
    HW_pad = S_pad * 128
    n_pad = HW_pad - HW                       # padded pixels per image

    # Second "parallel" spatial-chunk axis so both v7x TensorCores get work
    # when the batch axis alone can't be split evenly.
    P = 2 if (T >= 2 and T % 2 == 0 and N % 2 == 1) else 1
    Tp = T // P

    lab_dtype = jnp.int8 if C < 127 else jnp.int32   # 4x less label traffic
    x = inputs_nchw.reshape(N, C, HW)
    lab = labels_nhw.reshape(N, HW).astype(lab_dtype)
    if n_pad:
        # TODO(synk): ragged HW pays for one HBM pad copy of the logits here;
        # prefer HW % (tile_s*128) == 0 upstream.  Padded logits are a large
        # negative constant (softmax -> 1/C, softplus/BCE -> exactly 0) and
        # padded labels carry the out-of-range sentinel C (one-hot -> 0), so
        # the only correction needed is the constant psum fix-up below.
        x = jnp.pad(x, ((0, 0), (0, 0), (0, n_pad)), constant_values=-1e4)
        lab = jnp.pad(lab, ((0, 0), (0, n_pad)), constant_values=C)
    x = x.reshape(N, C, S_pad, 128)
    lab = lab.reshape(N, S_pad, 128)

    kernel = functools.partial(_dice_bce_kernel, num_classes=C, tile_s=tile_s)

    out_shape = (
        jax.ShapeDtypeStruct((N, P, C, 8, 128), jnp.float32),   # sum(p * t)
        jax.ShapeDtypeStruct((N, P, C, 8, 128), jnp.float32),   # sum(p)
        jax.ShapeDtypeStruct((N, P, C, 8, 128), jnp.float32),   # sum(t)
        jax.ShapeDtypeStruct((N, P, 8, 128), jnp.float32),      # BCE partials
    )
    out_specs = (
        pl.BlockSpec((1, 1, C, 8, 128), lambda n, p, t: (n, p, 0, 0, 0)),
        pl.BlockSpec((1, 1, C, 8, 128), lambda n, p, t: (n, p, 0, 0, 0)),
        pl.BlockSpec((1, 1, C, 8, 128), lambda n, p, t: (n, p, 0, 0, 0)),
        pl.BlockSpec((1, 1, 8, 128), lambda n, p, t: (n, p, 0, 0)),
    )

    inter, psum, tsum, bce_p = pl.pallas_call(
        kernel,
        out_shape=out_shape,
        grid=(N, P, Tp),
        in_specs=[
            pl.BlockSpec((1, C, tile_s, 128),
                         lambda n, p, t: (n, 0, p * Tp + t, 0)),
            pl.BlockSpec((1, tile_s, 128),
                         lambda n, p, t: (n, p * Tp + t, 0)),
        ],
        out_specs=out_specs,
        compiler_params=pltpu.CompilerParams(
            dimension_semantics=("parallel", "parallel", "arbitrary"),
            vmem_limit_bytes=vmem_limit),
    )(x, lab)

    # Tiny final mix in the wrapper (collapse P / sublane / lane axes).
    inter_c = jnp.sum(inter, axis=(1, 3, 4))    # (N, C)
    psum_c = jnp.sum(psum, axis=(1, 3, 4))      # (N, C)
    tsum_c = jnp.sum(tsum, axis=(1, 3, 4))      # (N, C)
    bce_sum = jnp.sum(bce_p)                    # scalar
    if n_pad:
        # Each padded pixel contributes exactly 1/C to every channel of psum;
        # inter/tsum (sentinel label) and BCE (softplus clamps to 0) get 0.
        psum_c = psum_c - (float(n_pad) / float(C))

    dice_per_image = jnp.sum(
        (2.0 * inter_c + smooth) / (psum_c + tsum_c + smooth), axis=1)   # (N,)
    dice = jnp.mean(dice_per_image) / float(C)
    dice_loss = 1.0 - dice
    bce = bce_sum / float(N * C * HW)
    return bce_weight * bce + dice_loss


def _reference(x_nchw, labels_nhw, smooth, bce_weight):
    """Pure-JAX transcription of the PyTorch module (correctness check)."""
    N, C, H, W = x_nchw.shape
    onehot = jax.nn.one_hot(labels_nhw, C, axis=1, dtype=jnp.float32)
    # Dice (softmax branch)
    p = jax.nn.softmax(x_nchw, axis=1)
    dice = 0.0
    for i in range(C):
        ci = p[:, i].reshape(N, -1)
        ti = onehot[:, i].reshape(N, -1)
        inter = jnp.sum(ci * ti, axis=1)
        dice += (2.0 * inter + smooth) / (ci.sum(axis=1) + ti.sum(axis=1) + smooth)
    dice = jnp.mean(dice) / float(C)
    dice_loss = 1.0 - dice
    # BCE on sigmoid(logits), mean over all elements (moderate logits -> stable)
    s = jax.nn.sigmoid(x_nchw)
    bce = jnp.mean(-(onehot * jnp.log(s) + (1.0 - onehot) * jnp.log(1.0 - s)))
    return bce_weight * bce + dice_loss


if __name__ == "__main__":
    key = jax.random.PRNGKey(0)
    N, C, H, W = 2, 4, 16, 16
    k1, k2 = jax.random.split(key)

    x = jax.random.normal(k1, (N, C, H, W), dtype=jnp.float32)   # logits
    labels = jax.random.randint(k2, (N, H, W), 0, C)             # class labels

    smooth, bce_weight = 1.0, 0.5

    loss = dice_loss_with_bce(x, labels, smooth=smooth, bce_weight=bce_weight)
    loss = jax.block_until_ready(loss)

    ref = _reference(x, labels, smooth, bce_weight)
    assert jnp.allclose(loss, ref, rtol=1e-5, atol=1e-5), (float(loss), float(ref))

    print("KERNEL_OK")
</pallas_src>

<mosaic_0001>
module attributes {stable_mosaic.version = 11 : i64} {
  func.func @_dice_bce_kernel(%arg0: i32, %arg1: i32, %arg2: i32, %arg3: memref<1x4x32x128xf32, #tpu.memory_space<vmem>>, %arg4: memref<1x32x128xi8, #tpu.memory_space<vmem>>, %arg5: memref<1x1x4x8x128xf32, #tpu.memory_space<vmem>>, %arg6: memref<1x1x4x8x128xf32, #tpu.memory_space<vmem>>, %arg7: memref<1x1x4x8x128xf32, #tpu.memory_space<vmem>>, %arg8: memref<1x1x8x128xf32, #tpu.memory_space<vmem>>) attributes {dimension_semantics = [#tpu.dimension_semantics<parallel>, #tpu.dimension_semantics<parallel>, #tpu.dimension_semantics<arbitrary>], iteration_bounds = array<i64: 2, 1, 1>, scalar_prefetch = 0 : i64, scratch_operands = 0 : i64, tpu.core_type = #tpu.core_type<tc>, window_params = [{transform_indices = @transform_0, window_bounds = array<i64: 1, 4, 32, 128>}, {transform_indices = @transform_1, window_bounds = array<i64: 1, 32, 128>}, {transform_indices = @transform_2, window_bounds = array<i64: 1, 1, 4, 8, 128>}, {transform_indices = @transform_3, window_bounds = array<i64: 1, 1, 4, 8, 128>}, {transform_indices = @transform_4, window_bounds = array<i64: 1, 1, 4, 8, 128>}, {transform_indices = @transform_5, window_bounds = array<i64: 1, 1, 8, 128>}]} {
    %c0_i32 = arith.constant 0 : i32
    %0 = arith.cmpi eq, %arg2, %c0_i32 : i32
    %1 = arith.extui %0 : i1 to i32
    %c0_i32_0 = arith.constant 0 : i32
    %2 = arith.cmpi ne, %1, %c0_i32_0 : i32
    scf.if %2 {
      %cst_55 = arith.constant 0.000000e+00 : f32
      %87 = vector.broadcast %cst_55 : f32 to vector<1x1x4x8x128xf32>
      %c0_56 = arith.constant 0 : index
      %c0_57 = arith.constant 0 : index
      %c0_58 = arith.constant 0 : index
      %c0_59 = arith.constant 0 : index
      %c0_60 = arith.constant 0 : index
      %88 = vector.load %arg5[%c0_56, %c0_57, %c0_58, %c0_59, %c0_60] : memref<1x1x4x8x128xf32, #tpu.memory_space<vmem>>, vector<1x1x4x8x128xf32>
      tpu.vector_store %arg5[%c0_56, %c0_57, %c0_58, %c0_59, %c0_60], %87 {strides = array<i32>} : memref<1x1x4x8x128xf32, #tpu.memory_space<vmem>>, vector<1x1x4x8x128xf32>,
      %cst_61 = arith.constant 0.000000e+00 : f32
      %89 = vector.broadcast %cst_61 : f32 to vector<1x1x4x8x128xf32>
      %c0_62 = arith.constant 0 : index
      %c0_63 = arith.constant 0 : index
      %c0_64 = arith.constant 0 : index
      %c0_65 = arith.constant 0 : index
      %c0_66 = arith.constant 0 : index
      %90 = vector.load %arg6[%c0_62, %c0_63, %c0_64, %c0_65, %c0_66] : memref<1x1x4x8x128xf32, #tpu.memory_space<vmem>>, vector<1x1x4x8x128xf32>
      tpu.vector_store %arg6[%c0_62, %c0_63, %c0_64, %c0_65, %c0_66], %89 {strides = array<i32>} : memref<1x1x4x8x128xf32, #tpu.memory_space<vmem>>, vector<1x1x4x8x128xf32>,
      %cst_67 = arith.constant 0.000000e+00 : f32
      %91 = vector.broadcast %cst_67 : f32 to vector<1x1x4x8x128xf32>
      %c0_68 = arith.constant 0 : index
      %c0_69 = arith.constant 0 : index
      %c0_70 = arith.constant 0 : index
      %c0_71 = arith.constant 0 : index
      %c0_72 = arith.constant 0 : index
      %92 = vector.load %arg7[%c0_68, %c0_69, %c0_70, %c0_71, %c0_72] : memref<1x1x4x8x128xf32, #tpu.memory_space<vmem>>, vector<1x1x4x8x128xf32>
      tpu.vector_store %arg7[%c0_68, %c0_69, %c0_70, %c0_71, %c0_72], %91 {strides = array<i32>} : memref<1x1x4x8x128xf32, #tpu.memory_space<vmem>>, vector<1x1x4x8x128xf32>,
      %cst_73 = arith.constant 0.000000e+00 : f32
      %93 = vector.broadcast %cst_73 : f32 to vector<1x1x8x128xf32>
      %c0_74 = arith.constant 0 : index
      %c0_75 = arith.constant 0 : index
      %c0_76 = arith.constant 0 : index
      %c0_77 = arith.constant 0 : index
      %94 = vector.load %arg8[%c0_74, %c0_75, %c0_76, %c0_77] : memref<1x1x8x128xf32, #tpu.memory_space<vmem>>, vector<1x1x8x128xf32>
      tpu.vector_store %arg8[%c0_74, %c0_75, %c0_76, %c0_77], %93 {strides = array<i32>} : memref<1x1x8x128xf32, #tpu.memory_space<vmem>>, vector<1x1x8x128xf32>,
    } else {
    }
    %c0 = arith.constant 0 : index
    %c0_1 = arith.constant 0 : index
    %c0_2 = arith.constant 0 : index
    %c0_3 = arith.constant 0 : index
    %3 = vector.load %arg3[%c0, %c0_1, %c0_2, %c0_3] : memref<1x4x32x128xf32, #tpu.memory_space<vmem>>, vector<1x4x32x128xf32>
    %4 = vector.shape_cast %3 : vector<1x4x32x128xf32> to vector<4x32x128xf32>
    %c0_4 = arith.constant 0 : index
    %c0_5 = arith.constant 0 : index
    %c0_6 = arith.constant 0 : index
    %5 = vector.load %arg4[%c0_4, %c0_5, %c0_6] : memref<1x32x128xi8, #tpu.memory_space<vmem>>, vector<1x32x128xi8>
    %6 = vector.shape_cast %5 : vector<1x32x128xi8> to vector<32x128xi8>
    %7 = arith.extsi %6 : vector<32x128xi8> to vector<32x128xi32>
    %c0_i32_7 = arith.constant 0 : i32
    %8 = vector.broadcast %c0_i32_7 : i32 to vector<32x128xi32>
    %9 = arith.cmpi eq, %7, %8 : vector<32x128xi32>
    %10 = arith.extui %9 : vector<32x128xi1> to vector<32x128xi32>
    %11 = arith.sitofp %10 : vector<32x128xi32> to vector<32x128xf32>
    %c1_i32 = arith.constant 1 : i32
    %12 = vector.broadcast %c1_i32 : i32 to vector<32x128xi32>
    %13 = arith.cmpi eq, %7, %12 : vector<32x128xi32>
    %14 = arith.extui %13 : vector<32x128xi1> to vector<32x128xi32>
    %15 = arith.sitofp %14 : vector<32x128xi32> to vector<32x128xf32>
    %c2_i32 = arith.constant 2 : i32
    %16 = vector.broadcast %c2_i32 : i32 to vector<32x128xi32>
    %17 = arith.cmpi eq, %7, %16 : vector<32x128xi32>
    %18 = arith.extui %17 : vector<32x128xi1> to vector<32x128xi32>
    %19 = arith.sitofp %18 : vector<32x128xi32> to vector<32x128xf32>
    %c3_i32 = arith.constant 3 : i32
    %20 = vector.broadcast %c3_i32 : i32 to vector<32x128xi32>
    %21 = arith.cmpi eq, %7, %20 : vector<32x128xi32>
    %22 = arith.extui %21 : vector<32x128xi1> to vector<32x128xi32>
    %23 = arith.sitofp %22 : vector<32x128xi32> to vector<32x128xf32>
    %24 = vector.shape_cast %11 : vector<32x128xf32> to vector<1x32x128xf32>
    %25 = vector.shape_cast %15 : vector<32x128xf32> to vector<1x32x128xf32>
    %26 = vector.shape_cast %19 : vector<32x128xf32> to vector<1x32x128xf32>
    %27 = vector.shape_cast %23 : vector<32x128xf32> to vector<1x32x128xf32>
    %28 = tpu.concatenate %24, %25, %26, %27 in 0 : vector<1x32x128xf32>, vector<1x32x128xf32>, vector<1x32x128xf32>, vector<1x32x128xf32> -> vector<4x32x128xf32>
    %cst = arith.constant dense<0xFF800000> : vector<32x128xf32>
    %29 = vector.multi_reduction <maximumf>, %4, %cst [0] : vector<4x32x128xf32> to vector<32x128xf32>
    %30 = vector.shape_cast %29 : vector<32x128xf32> to vector<1x32x128xf32>
    %31 = vector.broadcast %30 : vector<1x32x128xf32> to vector<4x32x128xf32>
    %32 = arith.subf %4, %31 : vector<4x32x128xf32>
    %33 = math.exp %32 : vector<4x32x128xf32>
    %cst_8 = arith.constant dense<0.000000e+00> : vector<32x128xf32>
    %34 = vector.multi_reduction <add>, %33, %cst_8 [0] : vector<4x32x128xf32> to vector<32x128xf32>
    %35 = vector.shape_cast %34 : vector<32x128xf32> to vector<1x32x128xf32>
    %36 = tpu.reciprocal %35 : vector<1x32x128xf32> -> vector<1x32x128xf32>
    %37 = vector.broadcast %36 : vector<1x32x128xf32> to vector<4x32x128xf32>
    %38 = arith.mulf %33, %37 : vector<4x32x128xf32>
    %cst_9 = arith.constant -6.000000e+01 : f32
    %39 = vector.broadcast %cst_9 : f32 to vector<1x32x128xf32>
    %40 = arith.maximumf %30, %39 : vector<1x32x128xf32>
    %cst_10 = arith.constant 0.000000e+00 : f32
    %41 = vector.broadcast %cst_10 : f32 to vector<1x32x128xf32>
    %42 = arith.subf %41, %40 : vector<1x32x128xf32>
    %43 = math.exp %42 : vector<1x32x128xf32>
    %44 = vector.broadcast %43 : vector<1x32x128xf32> to vector<4x32x128xf32>
    %45 = arith.addf %33, %44 : vector<4x32x128xf32>
    %46 = math.log %45 : vector<4x32x128xf32>
    %47 = vector.broadcast %30 : vector<1x32x128xf32> to vector<4x32x128xf32>
    %48 = arith.addf %47, %46 : vector<4x32x128xf32>
    %cst_11 = arith.constant 0.000000e+00 : f32
    %49 = vector.broadcast %cst_11 : f32 to vector<4x32x128xf32>
    %50 = arith.maximumf %48, %49 : vector<4x32x128xf32>
    %51 = arith.mulf %28, %4 : vector<4x32x128xf32>
    %52 = arith.subf %50, %51 : vector<4x32x128xf32>
    %c0_12 = arith.constant 0 : index
    %c0_13 = arith.constant 0 : index
    %c0_14 = arith.constant 0 : index
    %c0_15 = arith.constant 0 : index
    %c0_16 = arith.constant 0 : index
    %53 = vector.load %arg5[%c0_12, %c0_13, %c0_14, %c0_15, %c0_16] : memref<1x1x4x8x128xf32, #tpu.memory_space<vmem>>, vector<1x1x4x8x128xf32>
    %54 = vector.shape_cast %53 : vector<1x1x4x8x128xf32> to vector<4x8x128xf32>
    %55 = arith.mulf %38, %28 : vector<4x32x128xf32>
    %56 = vector.shape_cast %55 : vector<4x32x128xf32> to vector<4x4x8x128xf32>
    %cst_17 = arith.constant dense<0.000000e+00> : vector<4x8x128xf32>
    %57 = vector.multi_reduction <add>, %56, %cst_17 [1] : vector<4x4x8x128xf32> to vector<4x8x128xf32>
    %58 = arith.addf %54, %57 : vector<4x8x128xf32>
    %c0_18 = arith.constant 0 : index
    %c0_19 = arith.constant 0 : index
    %c0_20 = arith.constant 0 : index
    %c0_21 = arith.constant 0 : index
    %c0_22 = arith.constant 0 : index
    %59 = vector.load %arg5[%c0_18, %c0_19, %c0_20, %c0_21, %c0_22] : memref<1x1x4x8x128xf32, #tpu.memory_space<vmem>>, vector<1x1x4x8x128xf32>
    %60 = vector.shape_cast %59 : vector<1x1x4x8x128xf32> to vector<4x8x128xf32>
    %61 = vector.shape_cast %58 : vector<4x8x128xf32> to vector<1x1x4x8x128xf32>
    tpu.vector_store %arg5[%c0_18, %c0_19, %c0_20, %c0_21, %c0_22], %61 {strides = array<i32>} : memref<1x1x4x8x128xf32, #tpu.memory_space<vmem>>, vector<1x1x4x8x128xf32>,
    %c0_23 = arith.constant 0 : index
    %c0_24 = arith.constant 0 : index
    %c0_25 = arith.constant 0 : index
    %c0_26 = arith.constant 0 : index
    %c0_27 = arith.constant 0 : index
    %62 = vector.load %arg6[%c0_23, %c0_24, %c0_25, %c0_26, %c0_27] : memref<1x1x4x8x128xf32, #tpu.memory_space<vmem>>, vector<1x1x4x8x128xf32>
    %63 = vector.shape_cast %62 : vector<1x1x4x8x128xf32> to vector<4x8x128xf32>
    %64 = vector.shape_cast %38 : vector<4x32x128xf32> to vector<4x4x8x128xf32>
    %cst_28 = arith.constant dense<0.000000e+00> : vector<4x8x128xf32>
    %65 = vector.multi_reduction <add>, %64, %cst_28 [1] : vector<4x4x8x128xf32> to vector<4x8x128xf32>
    %66 = arith.addf %63, %65 : vector<4x8x128xf32>
    %c0_29 = arith.constant 0 : index
    %c0_30 = arith.constant 0 : index
    %c0_31 = arith.constant 0 : index
    %c0_32 = arith.constant 0 : index
    %c0_33 = arith.constant 0 : index
    %67 = vector.load %arg6[%c0_29, %c0_30, %c0_31, %c0_32, %c0_33] : memref<1x1x4x8x128xf32, #tpu.memory_space<vmem>>, vector<1x1x4x8x128xf32>
    %68 = vector.shape_cast %67 : vector<1x1x4x8x128xf32> to vector<4x8x128xf32>
    %69 = vector.shape_cast %66 : vector<4x8x128xf32> to vector<1x1x4x8x128xf32>
    tpu.vector_store %arg6[%c0_29, %c0_30, %c0_31, %c0_32, %c0_33], %69 {strides = array<i32>} : memref<1x1x4x8x128xf32, #tpu.memory_space<vmem>>, vector<1x1x4x8x128xf32>,
    %c0_34 = arith.constant 0 : index
    %c0_35 = arith.constant 0 : index
    %c0_36 = arith.constant 0 : index
    %c0_37 = arith.constant 0 : index
    %c0_38 = arith.constant 0 : index
    %70 = vector.load %arg7[%c0_34, %c0_35, %c0_36, %c0_37, %c0_38] : memref<1x1x4x8x128xf32, #tpu.memory_space<vmem>>, vector<1x1x4x8x128xf32>
    %71 = vector.shape_cast %70 : vector<1x1x4x8x128xf32> to vector<4x8x128xf32>
    %72 = vector.shape_cast %28 : vector<4x32x128xf32> to vector<4x4x8x128xf32>
    %cst_39 = arith.constant dense<0.000000e+00> : vector<4x8x128xf32>
    %73 = vector.multi_reduction <add>, %72, %cst_39 [1] : vector<4x4x8x128xf32> to vector<4x8x128xf32>
    %74 = arith.addf %71, %73 : vector<4x8x128xf32>
    %c0_40 = arith.constant 0 : index
    %c0_41 = arith.constant 0 : index
    %c0_42 = arith.constant 0 : index
    %c0_43 = arith.constant 0 : index
    %c0_44 = arith.constant 0 : index
    %75 = vector.load %arg7[%c0_40, %c0_41, %c0_42, %c0_43, %c0_44] : memref<1x1x4x8x128xf32, #tpu.memory_space<vmem>>, vector<1x1x4x8x128xf32>
    %76 = vector.shape_cast %75 : vector<1x1x4x8x128xf32> to vector<4x8x128xf32>
    %77 = vector.shape_cast %74 : vector<4x8x128xf32> to vector<1x1x4x8x128xf32>
    tpu.vector_store %arg7[%c0_40, %c0_41, %c0_42, %c0_43, %c0_44], %77 {strides = array<i32>} : memref<1x1x4x8x128xf32, #tpu.memory_space<vmem>>, vector<1x1x4x8x128xf32>,
    %c0_45 = arith.constant 0 : index
    %c0_46 = arith.constant 0 : index
    %c0_47 = arith.constant 0 : index
    %c0_48 = arith.constant 0 : index
    %78 = vector.load %arg8[%c0_45, %c0_46, %c0_47, %c0_48] : memref<1x1x8x128xf32, #tpu.memory_space<vmem>>, vector<1x1x8x128xf32>
    %79 = vector.shape_cast %78 : vector<1x1x8x128xf32> to vector<8x128xf32>
    %cst_49 = arith.constant dense<0.000000e+00> : vector<32x128xf32>
    %80 = vector.multi_reduction <add>, %52, %cst_49 [0] : vector<4x32x128xf32> to vector<32x128xf32>
    %81 = vector.shape_cast %80 : vector<32x128xf32> to vector<4x8x128xf32>
    %cst_50 = arith.constant dense<0.000000e+00> : vector<8x128xf32>
    %82 = vector.multi_reduction <add>, %81, %cst_50 [0] : vector<4x8x128xf32> to vector<8x128xf32>
    %83 = arith.addf %79, %82 : vector<8x128xf32>
    %c0_51 = arith.constant 0 : index
    %c0_52 = arith.constant 0 : index
    %c0_53 = arith.constant 0 : index
    %c0_54 = arith.constant 0 : index
    %84 = vector.load %arg8[%c0_51, %c0_52, %c0_53, %c0_54] : memref<1x1x8x128xf32, #tpu.memory_space<vmem>>, vector<1x1x8x128xf32>
    %85 = vector.shape_cast %84 : vector<1x1x8x128xf32> to vector<8x128xf32>
    %86 = vector.shape_cast %83 : vector<8x128xf32> to vector<1x1x8x128xf32>
    tpu.vector_store %arg8[%c0_51, %c0_52, %c0_53, %c0_54], %86 {strides = array<i32>} : memref<1x1x8x128xf32, #tpu.memory_space<vmem>>, vector<1x1x8x128xf32>,
    return
  }
  func.func @transform_0(%arg0: i32, %arg1: i32, %arg2: i32) -> (i32, i32, i32, i32) {
    %c1_i32 = arith.constant 1 : i32
    %0 = arith.muli %arg1, %c1_i32 : i32
    %1 = arith.addi %0, %arg2 : i32
    %c0_i32 = arith.constant 0 : i32
    %c0_i32_0 = arith.constant 0 : i32
    %c0_i32_1 = arith.constant 0 : i32
    return %arg0, %c0_i32, %1, %c0_i32_0 : i32, i32, i32, i32
  }
  func.func @transform_1(%arg0: i32, %arg1: i32, %arg2: i32) -> (i32, i32, i32) {
    %c1_i32 = arith.constant 1 : i32
    %0 = arith.muli %arg1, %c1_i32 : i32
    %1 = arith.addi %0, %arg2 : i32
    %c0_i32 = arith.constant 0 : i32
    %c0_i32_0 = arith.constant 0 : i32
    return %arg0, %1, %c0_i32 : i32, i32, i32
  }
  func.func @transform_2(%arg0: i32, %arg1: i32, %arg2: i32) -> (i32, i32, i32, i32, i32) {
    %c0_i32 = arith.constant 0 : i32
    %c0_i32_0 = arith.constant 0 : i32
    %c0_i32_1 = arith.constant 0 : i32
    %c0_i32_2 = arith.constant 0 : i32
    return %arg0, %arg1, %c0_i32, %c0_i32_0, %c0_i32_1 : i32, i32, i32, i32, i32
  }
  func.func @transform_3(%arg0: i32, %arg1: i32, %arg2: i32) -> (i32, i32, i32, i32, i32) {
    %c0_i32 = arith.constant 0 : i32
    %c0_i32_0 = arith.constant 0 : i32
    %c0_i32_1 = arith.constant 0 : i32
    %c0_i32_2 = arith.constant 0 : i32
    return %arg0, %arg1, %c0_i32, %c0_i32_0, %c0_i32_1 : i32, i32, i32, i32, i32
  }
  func.func @transform_4(%arg0: i32, %arg1: i32, %arg2: i32) -> (i32, i32, i32, i32, i32) {
    %c0_i32 = arith.constant 0 : i32
    %c0_i32_0 = arith.constant 0 : i32
    %c0_i32_1 = arith.constant 0 : i32
    %c0_i32_2 = arith.constant 0 : i32
    return %arg0, %arg1, %c0_i32, %c0_i32_0, %c0_i32_1 : i32, i32, i32, i32, i32
  }
  func.func @transform_5(%arg0: i32, %arg1: i32, %arg2: i32) -> (i32, i32, i32, i32) {
    %c0_i32 = arith.constant 0 : i32
    %c0_i32_0 = arith.constant 0 : i32
    %c0_i32_1 = arith.constant 0 : i32
    return %arg0, %arg1, %c0_i32, %c0_i32_0 : i32, i32, i32, i32
  }
}

</mosaic_0001>

<llo_original>
// kernel: tpu_custom_call.1
$region0: #{tpu_custom_call.1}
  #allocation0 [shape = 'u32[]', space=smem, size = 0x4, offset = 0x4, fixed_abs, tag = 'smem constant byte address 0x4 - core index']
  #allocation1 [shape = 'u32[144,128]{1,0:T(1,128)}', space=vmem, size = 0x12000, scoped, tag = 'internal scratch']
  %s0 = inlined_call_operand.hbm [shape: f32[2,4,32,128], index: 0, kind: input, shape index: {}]
  %s1 = inlined_call_operand.hbm [shape: s8[2,32,128], index: 1, kind: input, shape index: {}]
  %s2 = inlined_call_operand.hbm [shape: f32[2,1,4,8,128], index: 2, kind: output, shape index: {0}]
  %s3 = inlined_call_operand.hbm [shape: f32[2,1,4,8,128], index: 3, kind: output, shape index: {1}]
  %s4 = inlined_call_operand.hbm [shape: f32[2,1,4,8,128], index: 4, kind: output, shape index: {2}]
  %s5 = inlined_call_operand.hbm [shape: f32[2,1,8,128], index: 5, kind: output, shape index: {3}]
  %6 = xla_tuple %s2, %s3, %s4, %s5
  %s7 = sld [smem:[#allocation0]]
  $region77: #{tpu_custom_call.1} parent=0
    _
  %s9 = ssub.s32 1, %s7
  %s10 = scalar_select 0, %s9, %s7
  $region1: #{tpu_custom_call.1} parent=0
    #allocation2 [shape = 'u8[131072]{0}', space=vmem, size = 0x20000, scoped, tag = 'input window, operand 0']
    #allocation3 [shape = 's32[2]{0}', space=sflag, size = 0x8, scoped, tag = 'scoped memory for tpu_custom_call.1']
    #allocation4 [shape = 's32[2]{0}', space=sflag, size = 0x8, scoped, tag = 'scoped memory for tpu_custom_call.1']
    #allocation5 [shape = 'u8[8192]{0}', space=vmem, size = 0x2000, scoped, tag = 'input window, operand 1']
    #allocation6 [shape = 's32[2]{0}', space=sflag, size = 0x8, scoped, tag = 'scoped memory for tpu_custom_call.1']
    #allocation7 [shape = 'u8[32768]{0}', space=vmem, size = 0x8000, scoped, tag = 'output window, operand 0']
    #allocation8 [shape = 'u8[32768]{0}', space=vmem, size = 0x8000, scoped, tag = 'output window, operand 1']
    #allocation9 [shape = 's32[2]{0}', space=sflag, size = 0x8, scoped, tag = 'scoped memory for tpu_custom_call.1']
    #allocation10 [shape = 'u8[32768]{0}', space=vmem, size = 0x8000, scoped, tag = 'output window, operand 2']
    #allocation11 [shape = 'u8[8192]{0}', space=vmem, size = 0x2000, scoped, tag = 'output window, operand 3']
    #allocation12 [shape = 's32[2]{0}', space=sflag, size = 0x8, scoped, tag = 'scoped memory for tpu_custom_call.1']
    %11 = vsyncpa [#allocation3], 0
    %s12 = scalar_lea.sflag [#allocation3], 1
    %13 = vsyncpa %s12, 0
    %14 = vsyncpa [#allocation6], 0
    %s15 = scalar_lea.sflag [#allocation6], 1
    %16 = vsyncpa %s15, 0
    %17 = vsyncpa [#allocation4], 0
    %s18 = scalar_lea.sflag [#allocation4], 1
    %19 = vsyncpa %s18, 0
    %20 = vsyncpa [#allocation9], 0
    %s21 = scalar_lea.sflag [#allocation9], 1
    %22 = vsyncpa %s21, 0
    %23 = vsyncpa [#allocation12], 0
    %s24 = scalar_lea.sflag [#allocation12], 1
    %25 = vsyncpa %s24, 0
    loop: start=0, step=1, limit=4
    $region2: #{tpu_custom_call.1} parent=1 // loop_pre_header
      _
    $region3: #{tpu_custom_call.1} parent=1 // loop_header
      %s27 = sphi 0, %s31
      %p28 = scmp.ge.s32.totalorder %s27, 4
      %s34 = sphi 0, %s53
      %s35 = sphi 0, %s49
      %s36 = sphi 0, %s45
      %s37 = sphi 0, %s34
      %s38 = sphi 0, %s35
      %s39 = sphi 0, %s36
      %s40 = sphi 0, %s37
      %s41 = sphi 0, %s38
      %s42 = sphi 0, %s39
      %s60 = sphi 0, %s62
      %s63 = sphi 0, %s60
      %s64 = sphi 0, %s63
      %s80 = sphi 0, %s64
      %s90 = sphi 0, %s92
      %s93 = sphi 0, %s90
      %s94 = sphi 0, %s93
      %s110 = sphi 0, %s94
      %s118 = sphi 0, %s120
      %s121 = sphi 0, %s118
      %s122 = sphi 0, %s121
      %s138 = sphi 0, %s122
      %s146 = sphi 0, %s148
      %s149 = sphi 0, %s146
      %s150 = sphi 0, %s149
      %s166 = sphi 0, %s150
      %s174 = sphi 0, %s176
      %s177 = sphi 0, %s174
      %s178 = sphi 0, %s177
      %s194 = sphi 0, %s178
      %s202 = sphi 0, %s204
      %s205 = sphi 0, %s202
      %s206 = sphi 0, %s205
      %s222 = sphi 0, %s206
    $region4: #{tpu_custom_call.1} parent=1 // loop_header_branch
      %30 = sbr.rel (%p28) target = $region8
    $region5: #{tpu_custom_call.1} parent=1 // loop_body
      %s32 = ssub.s32 %s27, 1
      %s33 = ssub.s32 %s27, 2
      %s43 = sadd.s32 1, %s36
      %p44 = scmp.ge.s32.totalorder %s43, 1
      %s45 = scalar_select %p44, 0, %s43
      %s46 = sadd.s32 1, %s35
      %s47 = scalar_select %p44, %s46, %s35
      %p48 = scmp.ge.s32.totalorder %s47, 1
      %s49 = scalar_select %p48, 0, %s47
      %s50 = sadd.s32 1, %s34
      %s51 = scalar_select %p48, %s50, %s34
      %p52 = scmp.ge.s32.totalorder %s51, 2
      %s53 = scalar_select %p52, 0, %s51
      %s54 = sadd.s32 %s35, %s36
      %s55 = sadd.s32 %s49, %s45
      %s56 = ssub.s32 %s34, %s53
      %s57 = ssub.s32 %s54, %s55
      %s58 = sor.u32 %s56, %s57
      %p59 = scmp.eq.s32.totalorder %s58, 0
      %s61 = sadd.s32 %s60, 1
      %s62 = scalar_select %p59, %s60, %s61
      %p65 = pneg %p59
      %p66 = scmp.eq.s32.totalorder %s27, 1
      %p67 = por %p65, %p66
      %p68 = scmp.ne.s32.totalorder %s60, %s63
      %p69 = scmp.eq.s32.totalorder %s27, 0
      %p70 = por %p68, %p69
      %p71 = scmp.ne.s32.totalorder %s60, %s63
      %p72 = scmp.eq.s32.totalorder %s32, 1
      %p73 = por %p71, %p72
      %p74 = scmp.ne.s32.totalorder %s63, %s64
      %p75 = scmp.eq.s32.totalorder %s32, 0
      %p76 = por %p74, %p75
      %p77 = scmp.ne.s32.totalorder %s63, %s64
      %p78 = scmp.eq.s32.totalorder %s33, 1
      %p79 = por %p77, %p78
      %p81 = scmp.ne.s32.totalorder %s64, %s80
      %p82 = scmp.eq.s32.totalorder %s33, 0
      %p83 = por %p81, %p82
      %s84 = sadd.s32 %s35, %s36
      %s85 = sadd.s32 %s49, %s45
      %s86 = ssub.s32 %s34, %s53
      %s87 = ssub.s32 %s84, %s85
      %s88 = sor.u32 %s86, %s87
      %p89 = scmp.eq.s32.totalorder %s88, 0
      %s91 = sadd.s32 %s90, 1
      %s92 = scalar_select %p89, %s90, %s91
      %p95 = pneg %p89
      %p96 = scmp.eq.s32.totalorder %s27, 1
      %p97 = por %p95, %p96
      %p98 = scmp.ne.s32.totalorder %s90, %s93
      %p99 = scmp.eq.s32.totalorder %s27, 0
      %p100 = por %p98, %p99
      %p101 = scmp.ne.s32.totalorder %s90, %s93
      %p102 = scmp.eq.s32.totalorder %s32, 1
      %p103 = por %p101, %p102
      %p104 = scmp.ne.s32.totalorder %s93, %s94
      %p105 = scmp.eq.s32.totalorder %s32, 0
      %p106 = por %p104, %p105
      %p107 = scmp.ne.s32.totalorder %s93, %s94
      %p108 = scmp.eq.s32.totalorder %s33, 1
      %p109 = por %p107, %p108
      %p111 = scmp.ne.s32.totalorder %s94, %s110
      %p112 = scmp.eq.s32.totalorder %s33, 0
      %p113 = por %p111, %p112
      %s114 = ssub.s32 %s34, %s53
      %s115 = ssub.s32 %s35, %s49
      %s116 = sor.u32 %s114, %s115
      %p117 = scmp.eq.s32.totalorder %s116, 0
      %s119 = sadd.s32 %s118, 1
      %s120 = scalar_select %p117, %s118, %s119
      %p123 = pneg %p117
      %p124 = scmp.eq.s32.totalorder %s27, 1
      %p125 = por %p123, %p124
      %p126 = scmp.ne.s32.totalorder %s118, %s121
      %p127 = scmp.eq.s32.totalorder %s27, 0
      %p128 = por %p126, %p127
      %p129 = scmp.ne.s32.totalorder %s118, %s121
      %p130 = scmp.eq.s32.totalorder %s32, 1
      %p131 = por %p129, %p130
      %p132 = scmp.ne.s32.totalorder %s121, %s122
      %p133 = scmp.eq.s32.totalorder %s32, 0
      %p134 = por %p132, %p133
      %p135 = scmp.ne.s32.totalorder %s121, %s122
      %p136 = scmp.eq.s32.totalorder %s33, 1
      %p137 = por %p135, %p136
      %p139 = scmp.ne.s32.totalorder %s122, %s138
      %p140 = scmp.eq.s32.totalorder %s33, 0
      %p141 = por %p139, %p140
      %s142 = ssub.s32 %s34, %s53
      %s143 = ssub.s32 %s35, %s49
      %s144 = sor.u32 %s142, %s143
      %p145 = scmp.eq.s32.totalorder %s144, 0
      %s147 = sadd.s32 %s146, 1
      %s148 = scalar_select %p145, %s146, %s147
      %p151 = pneg %p145
      %p152 = scmp.eq.s32.totalorder %s27, 1
      %p153 = por %p151, %p152
      %p154 = scmp.ne.s32.totalorder %s146, %s149
      %p155 = scmp.eq.s32.totalorder %s27, 0
      %p156 = por %p154, %p155
      %p157 = scmp.ne.s32.totalorder %s146, %s149
      %p158 = scmp.eq.s32.totalorder %s32, 1
      %p159 = por %p157, %p158
      %p160 = scmp.ne.s32.totalorder %s149, %s150
      %p161 = scmp.eq.s32.totalorder %s32, 0
      %p162 = por %p160, %p161
      %p163 = scmp.ne.s32.totalorder %s149, %s150
      %p164 = scmp.eq.s32.totalorder %s33, 1
      %p165 = por %p163, %p164
      %p167 = scmp.ne.s32.totalorder %s150, %s166
      %p168 = scmp.eq.s32.totalorder %s33, 0
      %p169 = por %p167, %p168
      %s170 = ssub.s32 %s34, %s53
      %s171 = ssub.s32 %s35, %s49
      %s172 = sor.u32 %s170, %s171
      %p173 = scmp.eq.s32.totalorder %s172, 0
      %s175 = sadd.s32 %s174, 1
      %s176 = scalar_select %p173, %s174, %s175
      %p179 = pneg %p173
      %p180 = scmp.eq.s32.totalorder %s27, 1
      %p181 = por %p179, %p180
      %p182 = scmp.ne.s32.totalorder %s174, %s177
      %p183 = scmp.eq.s32.totalorder %s27, 0
      %p184 = por %p182, %p183
      %p185 = scmp.ne.s32.totalorder %s174, %s177
      %p186 = scmp.eq.s32.totalorder %s32, 1
      %p187 = por %p185, %p186
      %p188 = scmp.ne.s32.totalorder %s177, %s178
      %p189 = scmp.eq.s32.totalorder %s32, 0
      %p190 = por %p188, %p189
      %p191 = scmp.ne.s32.totalorder %s177, %s178
      %p192 = scmp.eq.s32.totalorder %s33, 1
      %p193 = por %p191, %p192
      %p195 = scmp.ne.s32.totalorder %s178, %s194
      %p196 = scmp.eq.s32.totalorder %s33, 0
      %p197 = por %p195, %p196
      %s198 = ssub.s32 %s34, %s53
      %s199 = ssub.s32 %s35, %s49
      %s200 = sor.u32 %s198, %s199
      %p201 = scmp.eq.s32.totalorder %s200, 0
      %s203 = sadd.s32 %s202, 1
      %s204 = scalar_select %p201, %s202, %s203
      %p207 = pneg %p201
      %p208 = scmp.eq.s32.totalorder %s27, 1
      %p209 = por %p207, %p208
      %p210 = scmp.ne.s32.totalorder %s202, %s205
      %p211 = scmp.eq.s32.totalorder %s27, 0
      %p212 = por %p210, %p211
      %p213 = scmp.ne.s32.totalorder %s202, %s205
      %p214 = scmp.eq.s32.totalorder %s32, 1
      %p215 = por %p213, %p214
      %p216 = scmp.ne.s32.totalorder %s205, %s206
      %p217 = scmp.eq.s32.totalorder %s32, 0
      %p218 = por %p216, %p217
      %p219 = scmp.ne.s32.totalorder %s205, %s206
      %p220 = scmp.eq.s32.totalorder %s33, 1
      %p221 = por %p219, %p220
      %p223 = scmp.ne.s32.totalorder %s206, %s222
      %p224 = scmp.eq.s32.totalorder %s33, 0
      %p225 = por %p223, %p224
      %p226 = scmp.le.s32.totalorder 1, %s27
      %p227 = scmp.lt.s32.totalorder %s27, 3
      %p228 = pnand %p226, %p227
      %p229 = pneg %p228
      // Predicated region
      $region9: #{tpu_custom_call.1} parent=5 // pred_check
        _
      $region10: #{tpu_custom_call.1} parent=5 // pred_check_branch
        %231 = sbr.rel (%p228) target = $region12
      $region11: #{tpu_custom_call.1} parent=5 // pred_region
        %s232 = ssub.s32 %s27, 1
      $region12: #{tpu_custom_call.1} parent=5 // pred_fallthru
        _
      %p233 = scmp.lt.s32.totalorder %s27, 2
      // Predicated region
      $region13: #{tpu_custom_call.1} parent=5 // pred_check
        %p234 = pneg %p233
      $region14: #{tpu_custom_call.1} parent=5 // pred_check_branch
        %236 = sbr.rel (%p234) target = $region16
      $region15: #{tpu_custom_call.1} parent=5 // pred_region
        // Predicated region
        $region17: #{tpu_custom_call.1} parent=15 // pred_check
          %p237 = pneg %p70
        $region18: #{tpu_custom_call.1} parent=15 // pred_check_branch
          %239 = sbr.rel (%p237) target = $region20
        $region19: #{tpu_custom_call.1} parent=15 // pred_region
          %s240 = sand.u32 %s60, 1
          %s241 = scalar_lea.sflag [#allocation3], %s240
          %s242 = sand.u32 %s60, 1
          %s243 = smul.addr %s242, 128
          %s244 = scalar_lea.vmem [#allocation2], %s243
          %s245 = sadd.s32 %s35, %s36
          %s246 = smul.u32 4, %s245
          %s248 = ssub.s32 2048, 2048
          %249 = vsyncadd %s241, %s248
          %s250 = smul.addr %s34, 16
          %s251 = sadd.s32 %s246, %s250
          %s252 = smul.addr %s251, 128
          %s253 = scalar_lea.hbm %s0, %s252
          %s254 = sshll.u32 %s244, 4
          %s255 = int_to_ptr.vmem [resolvable:$true] %s254
          %260 = dma.hbm_to_vmem [thread:$0]  %s253, 2048, %s255, %s241, 128, 128, 8
        $region20: #{tpu_custom_call.1} parent=15 // pred_fallthru
          _
        // Predicated region
        $region21: #{tpu_custom_call.1} parent=15 // pred_check
          %p261 = pneg %p100
        $region22: #{tpu_custom_call.1} parent=15 // pred_check_branch
          %263 = sbr.rel (%p261) target = $region24
        $region23: #{tpu_custom_call.1} parent=15 // pred_region
          %s264 = sand.u32 %s90, 1
          %s265 = scalar_lea.sflag [#allocation6], %s264
          %s266 = sand.u32 %s90, 1
          %s267 = smul.addr %s266, 8
          %s268 = scalar_lea.vmem [#allocation5], %s267
          %s269 = sadd.s32 %s35, %s36
          %s271 = ssub.s32 128, 128
          %272 = vsyncadd %s265, %s271
          %s273 = sadd.s32 %s269, %s34
          %s274 = smul.addr %s273, 128
          %s275 = scalar_lea.hbm %s1, %s274
          %s277 = sshll.u32 %s268, 4
          %s278 = int_to_ptr.vmem [resolvable:$true] %s277
          %280 = dma.hbm_to_vmem [thread:$0]  %s275, 128, %s278, %s265
        $region24: #{tpu_custom_call.1} parent=15 // pred_fallthru
          _
      $region16: #{tpu_custom_call.1} parent=5 // pred_fallthru
        _
      %p281 = scmp.le.s32.totalorder 1, %s27
      %p282 = scmp.lt.s32.totalorder %s27, 3
      %p283 = pnand %p281, %p282
      %p284 = pneg %p283
      // Predicated region
      $region25: #{tpu_custom_call.1} parent=5 // pred_check
        _
      $region26: #{tpu_custom_call.1} parent=5 // pred_check_branch
        %286 = sbr.rel (%p283) target = $region28
      $region27: #{tpu_custom_call.1} parent=5 // pred_region
        %s287 = ssub.s32 %s27, 1
        %s288 = sand.u32 %s63, 1
        %s289 = scalar_lea.sflag [#allocation3], %s288
        %s290 = sand.u32 %s63, 1
        %s291 = smul.addr %s290, 128
        %s292 = scalar_lea.vmem [#allocation2], %s291
        // Predicated region
        $region29: #{tpu_custom_call.1} parent=27 // pred_check
          %p293 = pneg %p76
        $region30: #{tpu_custom_call.1} parent=27 // pred_check_branch
          %295 = sbr.rel (%p293) target = $region32
        $region31: #{tpu_custom_call.1} parent=27 // pred_region
          %296 = dma.done %s289, 2048
        $region32: #{tpu_custom_call.1} parent=27 // pred_fallthru
          _
        %s297 = sand.u32 %s93, 1
        %s298 = scalar_lea.sflag [#allocation6], %s297
        %s299 = sand.u32 %s93, 1
        %s300 = smul.addr %s299, 8
        %s301 = scalar_lea.vmem [#allocation5], %s300
        // Predicated region
        $region33: #{tpu_custom_call.1} parent=27 // pred_check
          %p302 = pneg %p106
        $region34: #{tpu_custom_call.1} parent=27 // pred_check_branch
          %304 = sbr.rel (%p302) target = $region36
        $region35: #{tpu_custom_call.1} parent=27 // pred_region
          %305 = dma.done %s298, 128
        $region36: #{tpu_custom_call.1} parent=27 // pred_fallthru
          _
        %s306 = sand.u32 %s63, 1
        %s307 = scalar_lea.sflag [#allocation3], %s306
        %s308 = sand.u32 %s63, 1
        %s309 = smul.addr %s308, 128
        %s310 = scalar_lea.vmem [#allocation2], %s309
        %p311 = pneg %p76
        %p312 = pneg %p73
        %s313 = sand.u32 %s93, 1
        %s314 = scalar_lea.sflag [#allocation6], %s313
        %s315 = sand.u32 %s93, 1
        %s316 = smul.addr %s315, 8
        %s317 = scalar_lea.vmem [#allocation5], %s316
        %p318 = pneg %p106
        %p319 = pneg %p103
        %p320 = pneg %p134
        %p321 = pneg %p131
        %s322 = sand.u32 %s121, 1
        %s323 = scalar_lea.sflag [#allocation4], %s322
        %s324 = sand.u32 %s121, 1
        %s325 = smul.addr %s324, 32
        %s326 = scalar_lea.vmem [#allocation7], %s325
        %p327 = pneg %p162
        %p328 = pneg %p159
        %s329 = sand.u32 %s32, 1
        %s330 = scalar_lea.sflag [#allocation9], %s329
        %s331 = sand.u32 %s149, 1
        %s332 = smul.addr %s331, 32
        %s333 = scalar_lea.vmem [#allocation8], %s332
        %p334 = pneg %p190
        %p335 = pneg %p187
        %s336 = sand.u32 %s32, 1
        %s337 = scalar_lea.sflag [#allocation9], %s336
        %s338 = sand.u32 %s177, 1
        %s339 = smul.addr %s338, 32
        %s340 = scalar_lea.vmem [#allocation10], %s339
        %p341 = pneg %p218
        %p342 = pneg %p215
        %s343 = sand.u32 %s205, 1
        %s344 = scalar_lea.sflag [#allocation12], %s343
        %s345 = sand.u32 %s205, 1
        %s346 = smul.addr %s345, 8
        %s347 = scalar_lea.vmem [#allocation11], %s346
        %s348 = sadd.s32 %s38, %s39
        %s349 = smul.u32 4, %s348
        %s350 = sadd.s32 %s38, %s39
        %p351 = scmp.eq.s32.totalorder %s39, 0
        // Predicated region
        $region37: #{tpu_custom_call.1} parent=27 // pred_check
          %p352 = pneg %p351
        $region38: #{tpu_custom_call.1} parent=27 // pred_check_branch
          %354 = sbr.rel (%p352) target = $region40
        $region39: #{tpu_custom_call.1} parent=27 // pred_region
          %355 = vst [vmem:[%s326] sm:$0xff] 0.0
          %356 = vst [vmem:[%s326 + $0x8] sm:$0xff] 0.0
          %357 = vst [vmem:[%s326 + $0x10] sm:$0xff] 0.0
          %358 = vst [vmem:[%s326 + $0x18] sm:$0xff] 0.0
          %359 = vst [vmem:[%s333] sm:$0xff] 0.0
          %360 = vst [vmem:[%s333 + $0x8] sm:$0xff] 0.0
          %361 = vst [vmem:[%s333 + $0x10] sm:$0xff] 0.0
          %362 = vst [vmem:[%s333 + $0x18] sm:$0xff] 0.0
          %363 = vst [vmem:[%s340] sm:$0xff] 0.0
          %364 = vst [vmem:[%s340 + $0x8] sm:$0xff] 0.0
          %365 = vst [vmem:[%s340 + $0x10] sm:$0xff] 0.0
          %366 = vst [vmem:[%s340 + $0x18] sm:$0xff] 0.0
          %367 = vst [vmem:[%s347] sm:$0xff] 0.0
        $region40: #{tpu_custom_call.1} parent=27 // pred_fallthru
          _
        %v368 = vld [vmem:[%s292] sm:$0xff]
        %v369 = vld [vmem:[%s292 + $0x8] sm:$0xff]
        %v370 = vld [vmem:[%s292 + $0x10] sm:$0xff]
        %v371 = vld [vmem:[%s292 + $0x18] sm:$0xff]
        %v372 = vld [vmem:[%s292 + $0x20] sm:$0xff]
        %v373 = vld [vmem:[%s292 + $0x28] sm:$0xff]
        %v374 = vld [vmem:[%s292 + $0x30] sm:$0xff]
        %v375 = vld [vmem:[%s292 + $0x38] sm:$0xff]
        %v376 = vld [vmem:[%s292 + $0x40] sm:$0xff]
        %v377 = vld [vmem:[%s292 + $0x48] sm:$0xff]
        %v378 = vld [vmem:[%s292 + $0x50] sm:$0xff]
        %v379 = vld [vmem:[%s292 + $0x58] sm:$0xff]
        %v380 = vld [vmem:[%s292 + $0x60] sm:$0xff]
        %v381 = vld [vmem:[%s292 + $0x68] sm:$0xff]
        %v382 = vld [vmem:[%s292 + $0x70] sm:$0xff]
        %v383 = vld [vmem:[%s292 + $0x78] sm:$0xff]
        %v384 = vld [vmem:[%s301] sm:$0xff]
        %v385 = vunpack.c.0.s8 %v384
        %v386 = vunpack.c.1.s8 %v384
        %v387 = vunpack.c.2.s8 %v384
        %v388 = vunpack.c.3.s8 %v384
        %vm389 = vcmp.eq.s32.totalorder %v385, 0
        %vm390 = vcmp.eq.s32.totalorder %v386, 0
        %vm391 = vcmp.eq.s32.totalorder %v387, 0
        %vm392 = vcmp.eq.s32.totalorder %v388, 0
        %v393 = vsel %vm389, 1, 0
        %v394 = vsel %vm390, 1, 0
        %v395 = vsel %vm391, 1, 0
        %v396 = vsel %vm392, 1, 0
        %v397 = vcvt.s32.f32 %v393
        %v398 = vcvt.s32.f32 %v394
        %v399 = vcvt.s32.f32 %v395
        %v400 = vcvt.s32.f32 %v396
        %vm401 = vcmp.eq.s32.totalorder %v385, 1
        %vm402 = vcmp.eq.s32.totalorder %v386, 1
        %vm403 = vcmp.eq.s32.totalorder %v387, 1
        %vm404 = vcmp.eq.s32.totalorder %v388, 1
        %v405 = vsel %vm401, 1, 0
        %v406 = vsel %vm402, 1, 0
        %v407 = vsel %vm403, 1, 0
        %v408 = vsel %vm404, 1, 0
        %v409 = vcvt.s32.f32 %v405
        %v410 = vcvt.s32.f32 %v406
        %v411 = vcvt.s32.f32 %v407
        %v412 = vcvt.s32.f32 %v408
        %vm413 = vcmp.eq.s32.totalorder %v385, 2
        %vm414 = vcmp.eq.s32.totalorder %v386, 2
        %vm415 = vcmp.eq.s32.totalorder %v387, 2
        %vm416 = vcmp.eq.s32.totalorder %v388, 2
        %v417 = vsel %vm413, 1, 0
        %v418 = vsel %vm414, 1, 0
        %v419 = vsel %vm415, 1, 0
        %v420 = vsel %vm416, 1, 0
        %v421 = vcvt.s32.f32 %v417
        %v422 = vcvt.s32.f32 %v418
        %v423 = vcvt.s32.f32 %v419
        %v424 = vcvt.s32.f32 %v420
        %vm425 = vcmp.eq.s32.totalorder %v385, 3
        %vm426 = vcmp.eq.s32.totalorder %v386, 3
        %vm427 = vcmp.eq.s32.totalorder %v387, 3
        %vm428 = vcmp.eq.s32.totalorder %v388, 3
        %v429 = vsel %vm425, 1, 0
        %v430 = vsel %vm426, 1, 0
        %v431 = vsel %vm427, 1, 0
        %v432 = vsel %vm428, 1, 0
        %v433 = vcvt.s32.f32 %v429
        %v434 = vcvt.s32.f32 %v430
        %v435 = vcvt.s32.f32 %v431
        %v436 = vcvt.s32.f32 %v432
        %v437 = vmax.f32 %v368, %v372
        %v438 = vmax.f32 %v437, %v376
        %v439 = vmax.f32 %v438, %v380
        %v440 = vmax.f32 %v369, %v373
        %v441 = vmax.f32 %v440, %v377
        %v442 = vmax.f32 %v441, %v381
        %v443 = vmax.f32 %v370, %v374
        %v444 = vmax.f32 %v443, %v378
        %v445 = vmax.f32 %v444, %v382
        %v446 = vmax.f32 %v371, %v375
        %v447 = vmax.f32 %v446, %v379
        %v448 = vmax.f32 %v447, %v383
        %v449 = vsub.f32 %v368, %v439
        %v450 = vsub.f32 %v369, %v442
        %v451 = vsub.f32 %v370, %v445
        %v452 = vsub.f32 %v371, %v448
        %v453 = vsub.f32 %v372, %v439
        %v454 = vsub.f32 %v373, %v442
        %v455 = vsub.f32 %v374, %v445
        %v456 = vsub.f32 %v375, %v448
        %v457 = vsub.f32 %v376, %v439
        %v458 = vsub.f32 %v377, %v442
        %v459 = vsub.f32 %v378, %v445
        %v460 = vsub.f32 %v379, %v448
        %v461 = vsub.f32 %v380, %v439
        %v462 = vsub.f32 %v381, %v442
        %v463 = vsub.f32 %v382, %v445
        %v464 = vsub.f32 %v383, %v448
        %v465 = vmul.f32 %v449, 1.442695
        %v466 = vpow.pop %v465
        %v467 = vmul.f32 %v450, 1.442695
        %v468 = vpow.pop %v467
        %v469 = vmul.f32 %v451, 1.442695
        %v470 = vpow.pop %v469
        %v471 = vmul.f32 %v452, 1.442695
        %v472 = vpow.pop %v471
        %v473 = vmul.f32 %v453, 1.442695
        %v474 = vpow.pop %v473
        %v475 = vmul.f32 %v454, 1.442695
        %v476 = vpow.pop %v475
        %v477 = vmul.f32 %v455, 1.442695
        %v478 = vpow.pop %v477
        %v479 = vmul.f32 %v456, 1.442695
        %v480 = vpow.pop %v479
        %v481 = vmul.f32 %v457, 1.442695
        %v482 = vpow.pop %v481
        %v483 = vmul.f32 %v458, 1.442695
        %v484 = vpow.pop %v483
        %v485 = vmul.f32 %v459, 1.442695
        %v486 = vpow.pop %v485
        %v487 = vmul.f32 %v460, 1.442695
        %v488 = vpow.pop %v487
        %v489 = vmul.f32 %v461, 1.442695
        %v490 = vpow.pop %v489
        %v491 = vmul.f32 %v462, 1.442695
        %v492 = vpow.pop %v491
        %v493 = vmul.f32 %v463, 1.442695
        %v494 = vpow.pop %v493
        %v495 = vmul.f32 %v464, 1.442695
        %v496 = vpow.pop %v495
        %v497 = vadd.f32 %v466, %v474
        %v498 = vadd.f32 %v497, %v482
        %v499 = vadd.f32 %v498, %v490
        %v500 = vadd.f32 %v468, %v476
        %v501 = vadd.f32 %v500, %v484
        %v502 = vadd.f32 %v501, %v492
        %v503 = vadd.f32 %v470, %v478
        %v504 = vadd.f32 %v503, %v486
        %v505 = vadd.f32 %v504, %v494
        %v506 = vadd.f32 %v472, %v480
        %v507 = vadd.f32 %v506, %v488
        %v508 = vadd.f32 %v507, %v496
        %v509 = vrcp.pop %v499
        %v510 = vrcp.pop %v502
        %v511 = vrcp.pop %v505
        %v512 = vrcp.pop %v508
        %v513 = vmul.f32 %v466, %v509
        %v514 = vmul.f32 %v468, %v510
        %v515 = vmul.f32 %v470, %v511
        %v516 = vmul.f32 %v472, %v512
        %v517 = vmul.f32 %v474, %v509
        %v518 = vmul.f32 %v476, %v510
        %v519 = vmul.f32 %v478, %v511
        %v520 = vmul.f32 %v480, %v512
        %v521 = vmul.f32 %v482, %v509
        %v522 = vmul.f32 %v484, %v510
        %v523 = vmul.f32 %v486, %v511
        %v524 = vmul.f32 %v488, %v512
        %v525 = vmul.f32 %v490, %v509
        %v526 = vmul.f32 %v492, %v510
        %v527 = vmul.f32 %v494, %v511
        %v528 = vmul.f32 %v496, %v512
        %v529 = vmax.f32 %v439, -60.0
        %v530 = vmax.f32 %v442, -60.0
        %v531 = vmax.f32 %v445, -60.0
        %v532 = vmax.f32 %v448, -60.0
        %v533 = vsub.f32 0.0, %v529
        %v534 = vsub.f32 0.0, %v530
        %v535 = vsub.f32 0.0, %v531
        %v536 = vsub.f32 0.0, %v532
        %v537 = vmul.f32 %v533, 1.442695
        %v538 = vpow.pop %v537
        %v539 = vmul.f32 %v534, 1.442695
        %v540 = vpow.pop %v539
        %v541 = vmul.f32 %v535, 1.442695
        %v542 = vpow.pop %v541
        %v543 = vmul.f32 %v536, 1.442695
        %v544 = vpow.pop %v543
        %v545 = vadd.f32 %v466, %v538
        %v546 = vadd.f32 %v468, %v540
        %v547 = vadd.f32 %v470, %v542
        %v548 = vadd.f32 %v472, %v544
        %v549 = vadd.f32 %v474, %v538
        %v550 = vadd.f32 %v476, %v540
        %v551 = vadd.f32 %v478, %v542
        %v552 = vadd.f32 %v480, %v544
        %v553 = vadd.f32 %v482, %v538
        %v554 = vadd.f32 %v484, %v540
        %v555 = vadd.f32 %v486, %v542
        %v556 = vadd.f32 %v488, %v544
        %v557 = vadd.f32 %v490, %v538
        %v558 = vadd.f32 %v492, %v540
        %v559 = vadd.f32 %v494, %v542
        %v560 = vadd.f32 %v496, %v544
        %v561 = vlog2.pop %v545
        %v562 = vmul.f32 %v561, 0.6931472
        %v563 = vlog2.pop %v546
        %v564 = vmul.f32 %v563, 0.6931472
        %v565 = vlog2.pop %v547
        %v566 = vmul.f32 %v565, 0.6931472
        %v567 = vlog2.pop %v548
        %v568 = vmul.f32 %v567, 0.6931472
        %v569 = vlog2.pop %v549
        %v570 = vmul.f32 %v569, 0.6931472
        %v571 = vlog2.pop %v550
        %v572 = vmul.f32 %v571, 0.6931472
        %v573 = vlog2.pop %v551
        %v574 = vmul.f32 %v573, 0.6931472
        %v575 = vlog2.pop %v552
        %v576 = vmul.f32 %v575, 0.6931472
        %v577 = vlog2.pop %v553
        %v578 = vmul.f32 %v577, 0.6931472
        %v579 = vlog2.pop %v554
        %v580 = vmul.f32 %v579, 0.6931472
        %v581 = vlog2.pop %v555
        %v582 = vmul.f32 %v581, 0.6931472
        %v583 = vlog2.pop %v556
        %v584 = vmul.f32 %v583, 0.6931472
        %v585 = vlog2.pop %v557
        %v586 = vmul.f32 %v585, 0.6931472
        %v587 = vlog2.pop %v558
        %v588 = vmul.f32 %v587, 0.6931472
        %v589 = vlog2.pop %v559
        %v590 = vmul.f32 %v589, 0.6931472
        %v591 = vlog2.pop %v560
        %v592 = vmul.f32 %v591, 0.6931472
        %v593 = vadd.f32 %v439, %v562
        %v594 = vadd.f32 %v442, %v564
        %v595 = vadd.f32 %v445, %v566
        %v596 = vadd.f32 %v448, %v568
        %v597 = vadd.f32 %v439, %v570
        %v598 = vadd.f32 %v442, %v572
        %v599 = vadd.f32 %v445, %v574
        %v600 = vadd.f32 %v448, %v576
        %v601 = vadd.f32 %v439, %v578
        %v602 = vadd.f32 %v442, %v580
        %v603 = vadd.f32 %v445, %v582
        %v604 = vadd.f32 %v448, %v584
        %v605 = vadd.f32 %v439, %v586
        %v606 = vadd.f32 %v442, %v588
        %v607 = vadd.f32 %v445, %v590
        %v608 = vadd.f32 %v448, %v592
        %v609 = vmax.f32 %v593, 0.0
        %v610 = vmax.f32 %v594, 0.0
        %v611 = vmax.f32 %v595, 0.0
        %v612 = vmax.f32 %v596, 0.0
        %v613 = vmax.f32 %v597, 0.0
        %v614 = vmax.f32 %v598, 0.0
        %v615 = vmax.f32 %v599, 0.0
        %v616 = vmax.f32 %v600, 0.0
        %v617 = vmax.f32 %v601, 0.0
        %v618 = vmax.f32 %v602, 0.0
        %v619 = vmax.f32 %v603, 0.0
        %v620 = vmax.f32 %v604, 0.0
        %v621 = vmax.f32 %v605, 0.0
        %v622 = vmax.f32 %v606, 0.0
        %v623 = vmax.f32 %v607, 0.0
        %v624 = vmax.f32 %v608, 0.0
        %v625 = vmul.f32 %v397, %v368
        %v626 = vmul.f32 %v398, %v369
        %v627 = vmul.f32 %v399, %v370
        %v628 = vmul.f32 %v400, %v371
        %v629 = vmul.f32 %v409, %v372
        %v630 = vmul.f32 %v410, %v373
        %v631 = vmul.f32 %v411, %v374
        %v632 = vmul.f32 %v412, %v375
        %v633 = vmul.f32 %v421, %v376
        %v634 = vmul.f32 %v422, %v377
        %v635 = vmul.f32 %v423, %v378
        %v636 = vmul.f32 %v424, %v379
        %v637 = vmul.f32 %v433, %v380
        %v638 = vmul.f32 %v434, %v381
        %v639 = vmul.f32 %v435, %v382
        %v640 = vmul.f32 %v436, %v383
        %v641 = vsub.f32 %v609, %v625
        %v642 = vsub.f32 %v610, %v626
        %v643 = vsub.f32 %v611, %v627
        %v644 = vsub.f32 %v612, %v628
        %v645 = vsub.f32 %v613, %v629
        %v646 = vsub.f32 %v614, %v630
        %v647 = vsub.f32 %v615, %v631
        %v648 = vsub.f32 %v616, %v632
        %v649 = vsub.f32 %v617, %v633
        %v650 = vsub.f32 %v618, %v634
        %v651 = vsub.f32 %v619, %v635
        %v652 = vsub.f32 %v620, %v636
        %v653 = vsub.f32 %v621, %v637
        %v654 = vsub.f32 %v622, %v638
        %v655 = vsub.f32 %v623, %v639
        %v656 = vsub.f32 %v624, %v640
        %v657 = vld [vmem:[%s326] sm:$0xff]
        %v658 = vld [vmem:[%s326 + $0x8] sm:$0xff]
        %v659 = vld [vmem:[%s326 + $0x10] sm:$0xff]
        %v660 = vld [vmem:[%s326 + $0x18] sm:$0xff]
        %v661 = vmul.f32 %v513, %v397
        %v662 = vmul.f32 %v514, %v398
        %v663 = vmul.f32 %v515, %v399
        %v664 = vmul.f32 %v516, %v400
        %v665 = vmul.f32 %v517, %v409
        %v666 = vmul.f32 %v518, %v410
        %v667 = vmul.f32 %v519, %v411
        %v668 = vmul.f32 %v520, %v412
        %v669 = vmul.f32 %v521, %v421
        %v670 = vmul.f32 %v522, %v422
        %v671 = vmul.f32 %v523, %v423
        %v672 = vmul.f32 %v524, %v424
        %v673 = vmul.f32 %v525, %v433
        %v674 = vmul.f32 %v526, %v434
        %v675 = vmul.f32 %v527, %v435
        %v676 = vmul.f32 %v528, %v436
        %v677 = vadd.f32 %v661, %v662
        %v678 = vadd.f32 %v677, %v663
        %v679 = vadd.f32 %v678, %v664
        %v680 = vadd.f32 %v665, %v666
        %v681 = vadd.f32 %v680, %v667
        %v682 = vadd.f32 %v681, %v668
        %v683 = vadd.f32 %v669, %v670
        %v684 = vadd.f32 %v683, %v671
        %v685 = vadd.f32 %v684, %v672
        %v686 = vadd.f32 %v673, %v674
        %v687 = vadd.f32 %v686, %v675
        %v688 = vadd.f32 %v687, %v676
        %v689 = vadd.f32 %v657, %v679
        %v690 = vadd.f32 %v658, %v682
        %v691 = vadd.f32 %v659, %v685
        %v692 = vadd.f32 %v660, %v688
        %693 = vst [vmem:[%s326] sm:$0xff] %v689
        %694 = vst [vmem:[%s326 + $0x8] sm:$0xff] %v690
        %695 = vst [vmem:[%s326 + $0x10] sm:$0xff] %v691
        %696 = vst [vmem:[%s326 + $0x18] sm:$0xff] %v692
        %v697 = vld [vmem:[%s333] sm:$0xff]
        %v698 = vld [vmem:[%s333 + $0x8] sm:$0xff]
        %v699 = vld [vmem:[%s333 + $0x10] sm:$0xff]
        %v700 = vld [vmem:[%s333 + $0x18] sm:$0xff]
        %v701 = vadd.f32 %v513, %v514
        %v702 = vadd.f32 %v701, %v515
        %v703 = vadd.f32 %v702, %v516
        %v704 = vadd.f32 %v517, %v518
        %v705 = vadd.f32 %v704, %v519
        %v706 = vadd.f32 %v705, %v520
        %v707 = vadd.f32 %v521, %v522
        %v708 = vadd.f32 %v707, %v523
        %v709 = vadd.f32 %v708, %v524
        %v710 = vadd.f32 %v525, %v526
        %v711 = vadd.f32 %v710, %v527
        %v712 = vadd.f32 %v711, %v528
        %v713 = vadd.f32 %v697, %v703
        %v714 = vadd.f32 %v698, %v706
        %v715 = vadd.f32 %v699, %v709
        %v716 = vadd.f32 %v700, %v712
        %717 = vst [vmem:[%s333] sm:$0xff] %v713
        %718 = vst [vmem:[%s333 + $0x8] sm:$0xff] %v714
        %719 = vst [vmem:[%s333 + $0x10] sm:$0xff] %v715
        %720 = vst [vmem:[%s333 + $0x18] sm:$0xff] %v716
        %v721 = vld [vmem:[%s340] sm:$0xff]
        %v722 = vld [vmem:[%s340 + $0x8] sm:$0xff]
        %v723 = vld [vmem:[%s340 + $0x10] sm:$0xff]
        %v724 = vld [vmem:[%s340 + $0x18] sm:$0xff]
        %v725 = vadd.f32 %v397, %v398
        %v726 = vadd.f32 %v725, %v399
        %v727 = vadd.f32 %v726, %v400
        %v728 = vadd.f32 %v409, %v410
        %v729 = vadd.f32 %v728, %v411
        %v730 = vadd.f32 %v729, %v412
        %v731 = vadd.f32 %v421, %v422
        %v732 = vadd.f32 %v731, %v423
        %v733 = vadd.f32 %v732, %v424
        %v734 = vadd.f32 %v433, %v434
        %v735 = vadd.f32 %v734, %v435
        %v736 = vadd.f32 %v735, %v436
        %v737 = vadd.f32 %v721, %v727
        %v738 = vadd.f32 %v722, %v730
        %v739 = vadd.f32 %v723, %v733
        %v740 = vadd.f32 %v724, %v736
        %741 = vst [vmem:[%s340] sm:$0xff] %v737
        %742 = vst [vmem:[%s340 + $0x8] sm:$0xff] %v738
        %743 = vst [vmem:[%s340 + $0x10] sm:$0xff] %v739
        %744 = vst [vmem:[%s340 + $0x18] sm:$0xff] %v740
        %v745 = vld [vmem:[%s347] sm:$0xff]
        %v746 = vadd.f32 %v641, %v645
        %v747 = vadd.f32 %v746, %v649
        %v748 = vadd.f32 %v747, %v653
        %v749 = vadd.f32 %v642, %v646
        %v750 = vadd.f32 %v749, %v650
        %v751 = vadd.f32 %v750, %v654
        %v752 = vadd.f32 %v643, %v647
        %v753 = vadd.f32 %v752, %v651
        %v754 = vadd.f32 %v753, %v655
        %v755 = vadd.f32 %v644, %v648
        %v756 = vadd.f32 %v755, %v652
        %v757 = vadd.f32 %v756, %v656
        %v758 = vadd.f32 %v748, %v751
        %v759 = vadd.f32 %v758, %v754
        %v760 = vadd.f32 %v759, %v757
        %v761 = vadd.f32 %v745, %v760
        %762 = vst [vmem:[%s347] sm:$0xff] %v761
        %s763 = sand.u32 %s121, 1
        %s764 = scalar_lea.sflag [#allocation4], %s763
        %s765 = sand.u32 %s121, 1
        %s766 = smul.addr %s765, 32
        %s767 = scalar_lea.vmem [#allocation7], %s766
        %s768 = sand.u32 %s32, 1
        %s769 = scalar_lea.sflag [#allocation9], %s768
        %s770 = sand.u32 %s149, 1
        %s771 = smul.addr %s770, 32
        %s772 = scalar_lea.vmem [#allocation8], %s771
        %s773 = sand.u32 %s32, 1
        %s774 = scalar_lea.sflag [#allocation9], %s773
        %s775 = sand.u32 %s177, 1
        %s776 = smul.addr %s775, 32
        %s777 = scalar_lea.vmem [#allocation10], %s776
        %s778 = sand.u32 %s205, 1
        %s779 = scalar_lea.sflag [#allocation12], %s778
        %s780 = sand.u32 %s205, 1
        %s781 = smul.addr %s780, 8
        %s782 = scalar_lea.vmem [#allocation11], %s781
        // Predicated region
        $region41: #{tpu_custom_call.1} parent=27 // pred_check
          %p783 = pneg %p131
        $region42: #{tpu_custom_call.1} parent=27 // pred_check_branch
          %785 = sbr.rel (%p783) target = $region44
        $region43: #{tpu_custom_call.1} parent=27 // pred_region
          %s787 = ssub.s32 512, 512
          %788 = vsyncadd %s764, %s787
          %s789 = smul.addr %s38, 4
          %s790 = smul.addr %s37, 4
          %s791 = sadd.s32 %s789, %s790
          %s792 = smul.addr %s791, 128
          %s793 = scalar_lea.hbm %s2, %s792
          %s794 = sshll.u32 %s767, 4
          %s795 = int_to_ptr.vmem [resolvable:$true] %s794
          %800 = dma.vmem_to_hbm [thread:$0]  %s795, 512, %s793, %s764, 128, 128, 8
        $region44: #{tpu_custom_call.1} parent=27 // pred_fallthru
          _
        // Predicated region
        $region45: #{tpu_custom_call.1} parent=27 // pred_check
          %p801 = pneg %p159
        $region46: #{tpu_custom_call.1} parent=27 // pred_check_branch
          %803 = sbr.rel (%p801) target = $region48
        $region47: #{tpu_custom_call.1} parent=27 // pred_region
          %s805 = ssub.s32 512, 512
          %806 = vsyncadd %s769, %s805
          %s807 = smul.addr %s38, 4
          %s808 = smul.addr %s37, 4
          %s809 = sadd.s32 %s807, %s808
          %s810 = smul.addr %s809, 128
          %s811 = scalar_lea.hbm %s3, %s810
          %s812 = sshll.u32 %s772, 4
          %s813 = int_to_ptr.vmem [resolvable:$true] %s812
          %818 = dma.vmem_to_hbm [thread:$0]  %s813, 512, %s811, %s769, 128, 128, 8
        $region48: #{tpu_custom_call.1} parent=27 // pred_fallthru
          _
        // Predicated region
        $region49: #{tpu_custom_call.1} parent=27 // pred_check
          %p819 = pneg %p187
        $region50: #{tpu_custom_call.1} parent=27 // pred_check_branch
          %821 = sbr.rel (%p819) target = $region52
        $region51: #{tpu_custom_call.1} parent=27 // pred_region
          %s823 = ssub.s32 512, 512
          %824 = vsyncadd %s774, %s823
          %s825 = smul.addr %s38, 4
          %s826 = smul.addr %s37, 4
          %s827 = sadd.s32 %s825, %s826
          %s828 = smul.addr %s827, 128
          %s829 = scalar_lea.hbm %s4, %s828
          %s830 = sshll.u32 %s777, 4
          %s831 = int_to_ptr.vmem [resolvable:$true] %s830
          %836 = dma.vmem_to_hbm [thread:$0]  %s831, 512, %s829, %s774, 128, 128, 8
        $region52: #{tpu_custom_call.1} parent=27 // pred_fallthru
          _
        // Predicated region
        $region53: #{tpu_custom_call.1} parent=27 // pred_check
          %p837 = pneg %p215
        $region54: #{tpu_custom_call.1} parent=27 // pred_check_branch
          %839 = sbr.rel (%p837) target = $region56
        $region55: #{tpu_custom_call.1} parent=27 // pred_region
          %s841 = ssub.s32 128, 128
          %842 = vsyncadd %s779, %s841
          %s843 = sadd.s32 %s38, %s37
          %s844 = smul.addr %s843, 128
          %s845 = scalar_lea.hbm %s5, %s844
          %s847 = sshll.u32 %s782, 4
          %s848 = int_to_ptr.vmem [resolvable:$true] %s847
          %850 = dma.vmem_to_hbm [thread:$0]  %s848, 128, %s845, %s779
        $region56: #{tpu_custom_call.1} parent=27 // pred_fallthru
          _
      $region28: #{tpu_custom_call.1} parent=5 // pred_fallthru
        _
      %p851 = scmp.le.s32.totalorder 2, %s27
      // Predicated region
      $region57: #{tpu_custom_call.1} parent=5 // pred_check
        %p852 = pneg %p851
      $region58: #{tpu_custom_call.1} parent=5 // pred_check_branch
        %854 = sbr.rel (%p852) target = $region60
      $region59: #{tpu_custom_call.1} parent=5 // pred_region
        %s855 = ssub.s32 %s27, 2
        // Predicated region
        $region61: #{tpu_custom_call.1} parent=59 // pred_check
          %p856 = pneg %p137
        $region62: #{tpu_custom_call.1} parent=59 // pred_check_branch
          %858 = sbr.rel (%p856) target = $region64
        $region63: #{tpu_custom_call.1} parent=59 // pred_region
          %s859 = sand.u32 %s122, 1
          %s860 = scalar_lea.sflag [#allocation4], %s859
          %s861 = sand.u32 %s122, 1
          %s862 = smul.addr %s861, 32
          %s863 = scalar_lea.vmem [#allocation7], %s862
          %864 = dma.done %s860, 512
        $region64: #{tpu_custom_call.1} parent=59 // pred_fallthru
          _
        // Predicated region
        $region65: #{tpu_custom_call.1} parent=59 // pred_check
          %p865 = pneg %p165
        $region66: #{tpu_custom_call.1} parent=59 // pred_check_branch
          %867 = sbr.rel (%p865) target = $region68
        $region67: #{tpu_custom_call.1} parent=59 // pred_region
          %s868 = sand.u32 %s33, 1
          %s869 = scalar_lea.sflag [#allocation9], %s868
          %s870 = sand.u32 %s150, 1
          %s871 = smul.addr %s870, 32
          %s872 = scalar_lea.vmem [#allocation8], %s871
          %873 = dma.done %s869, 512
        $region68: #{tpu_custom_call.1} parent=59 // pred_fallthru
          _
        // Predicated region
        $region69: #{tpu_custom_call.1} parent=59 // pred_check
          %p874 = pneg %p193
        $region70: #{tpu_custom_call.1} parent=59 // pred_check_branch
          %876 = sbr.rel (%p874) target = $region72
        $region71: #{tpu_custom_call.1} parent=59 // pred_region
          %s877 = sand.u32 %s33, 1
          %s878 = scalar_lea.sflag [#allocation9], %s877
          %s879 = sand.u32 %s178, 1
          %s880 = smul.addr %s879, 32
          %s881 = scalar_lea.vmem [#allocation10], %s880
          %882 = dma.done %s878, 512
        $region72: #{tpu_custom_call.1} parent=59 // pred_fallthru
          _
        // Predicated region
        $region73: #{tpu_custom_call.1} parent=59 // pred_check
          %p883 = pneg %p221
        $region74: #{tpu_custom_call.1} parent=59 // pred_check_branch
          %885 = sbr.rel (%p883) target = $region76
        $region75: #{tpu_custom_call.1} parent=59 // pred_region
          %s886 = sand.u32 %s206, 1
          %s887 = scalar_lea.sflag [#allocation12], %s886
          %s888 = sand.u32 %s206, 1
          %s889 = smul.addr %s888, 8
          %s890 = scalar_lea.vmem [#allocation11], %s889
          %891 = dma.done %s887, 128
        $region76: #{tpu_custom_call.1} parent=59 // pred_fallthru
          _
      $region60: #{tpu_custom_call.1} parent=5 // pred_fallthru
        _
    $region6: #{tpu_custom_call.1} parent=1 // loop_footer
      %s31 = sadd.s32 1, %s27
    $region7: #{tpu_custom_call.1} parent=1 // loop_footer_branch
      %26 = sbr.rel target = $region3
    $region8: #{tpu_custom_call.1} parent=1 // loop_exit
      _
    %892 = vsyncpa [#allocation3], 1
    %s893 = scalar_lea.sflag [#allocation3], 1
    %894 = vsyncpa %s893, 1
    %895 = vsyncpa [#allocation6], 1
    %s896 = scalar_lea.sflag [#allocation6], 1
    %897 = vsyncpa %s896, 1
    %898 = vsyncpa [#allocation4], 1
    %s899 = scalar_lea.sflag [#allocation4], 1
    %900 = vsyncpa %s899, 1
    %901 = vsyncpa [#allocation9], 1
    %s902 = scalar_lea.sflag [#allocation9], 1
    %903 = vsyncpa %s902, 1
    %904 = vsyncpa [#allocation12], 1
    %s905 = scalar_lea.sflag [#allocation12], 1
    %906 = vsyncpa %s905, 1

</llo_original>
